<compile_context>
chip_gen: v7x
topology: tpu7x:2x2x1
jax: 0.10.0
libtpu: 0.0.40
codegen_flags: <defaults>
</compile_context>

<pallas_src>
import jax
import jax.numpy as jnp
from jax.experimental import pallas as pl
from jax.experimental.pallas import tpu as pltpu

NEG_SLOPE = 0.01  # F.leaky_relu default


def _leaky_relu(x):
    return jnp.where(x > 0, x, NEG_SLOPE * x)


def _round_up(x, m):
    return (x + m - 1) // m * m


def qnetwork_kernel(x_ref, w1_ref, b1_ref, w2_ref, b2_ref, w3_ref, b3_ref, o_ref):
    # Fused 3-layer MLP for one batch tile.  Matmuls on the MXU with f32
    # operands / f32 accumulation (PyTorch semantics); bias add + leaky_relu on
    # the VPU.  The padded hidden lanes are exactly zero (zero weight cols +
    # zero bias lanes), so padding is numerically inert.
    x = x_ref[...]                                                       # (tb, S)  f32
    h1 = jnp.dot(x, w1_ref[...], preferred_element_type=jnp.float32) + b1_ref[...]
    h1 = _leaky_relu(h1)                                                 # (tb, Hp) f32
    h2 = jnp.dot(h1, w2_ref[...], preferred_element_type=jnp.float32) + b2_ref[...]
    h2 = _leaky_relu(h2)                                                 # (tb, Hp) f32
    o_ref[...] = (
        jnp.dot(h2, w3_ref[...], preferred_element_type=jnp.float32) + b3_ref[...]
    ).astype(o_ref.dtype)                                                # (tb, Op) f32


def prepare_params(params):
    """Pad + lay out the weights once, outside the per-call hot path.

    Weights are stored (in_features, out_features).  Hidden dims are padded to
    128 lanes for clean MXU tiles; the output dim is padded only to a multiple
    of 8 (tiny, stripped after the kernel).  Padding is zero, hence inert.
    """
    state_dim, hidden_dim = params["w1"].shape
    output_dim = params["w3"].shape[1]
    Hp = _round_up(hidden_dim, 128)
    Op = _round_up(max(output_dim, 8), 8)

    def pad2(a, rows, cols):
        a = jnp.asarray(a, jnp.float32).reshape((-1, a.shape[-1]))
        out = jnp.zeros((rows, cols), jnp.float32)
        return out.at[: a.shape[0], : a.shape[1]].set(a)

    return dict(
        w1=pad2(params["w1"], state_dim, Hp),
        b1=pad2(params["b1"], 1, Hp),
        w2=pad2(params["w2"], Hp, Hp),
        b2=pad2(params["b2"], 1, Hp),
        w3=pad2(params["w3"], Hp, Op),
        b3=pad2(params["b3"], 1, Op),
        output_dim=output_dim,  # python int; pass statically if you jit the wrapper
    )


def qnetwork_forward(x, prepared, *, batch_tile=4096):
    """x: (B, state_dim) float32.  prepared: output of prepare_params()."""
    B, state_dim = x.shape
    w1, b1 = prepared["w1"], prepared["b1"]
    w2, b2 = prepared["w2"], prepared["b2"]
    w3, b3 = prepared["w3"], prepared["b3"]
    output_dim = prepared["output_dim"]
    Hp = w1.shape[1]
    Op = w3.shape[1]

    # ---- batch tiling -------------------------------------------------------
    # Big tiles amortize the ~0.35us per-grid-step overhead.  Only split a tile
    # when each piece still has >= MIN_SPLIT rows (splitting tiny batches is
    # pure serial overhead on single-TensorCore v5e/v6e), and when splitting
    # keep the step count even so v7x's two TensorCores get balanced work.
    MIN_SPLIT = 1024
    B8 = _round_up(B, 8)
    tb = _round_up(min(batch_tile, B8), 8)
    steps = pl.cdiv(B8, tb)
    if steps % 2 == 1 and B8 >= 2 * MIN_SPLIT:
        tb = _round_up(pl.cdiv(B8, steps + 1), 8)
        steps = pl.cdiv(B8, tb)
    Bp = _round_up(B, tb)
    grid = (Bp // tb,)

    # Pad batch rows only if needed (no dtype cast, no lane padding of x).
    xp = x if Bp == B else jnp.zeros((Bp, state_dim), x.dtype).at[:B].set(x)

    rep = lambda shape: pl.BlockSpec(shape, lambda i: (0, 0))  # resident weights

    out_padded = pl.pallas_call(
        qnetwork_kernel,
        out_shape=jax.ShapeDtypeStruct((Bp, Op), jnp.float32),
        grid_spec=pltpu.PrefetchScalarGridSpec(
            num_scalar_prefetch=0,
            grid=grid,
            in_specs=[
                pl.BlockSpec((tb, state_dim), lambda i: (i, 0)),  # x tile (f32)
                rep((state_dim, Hp)),
                rep((1, Hp)),
                rep((Hp, Hp)),
                rep((1, Hp)),
                rep((Hp, Op)),
                rep((1, Op)),
            ],
            out_specs=pl.BlockSpec((tb, Op), lambda i: (i, 0)),
        ),
        compiler_params=pltpu.CompilerParams(
            dimension_semantics=("parallel",),
            # ~8 MiB used at tb=4096; 32 MiB is safe on every generation,
            # including v7x (64 MiB physical VMEM).
            vmem_limit_bytes=32 * 1024 * 1024,
        ),
    )(xp, w1, b1, w2, b2, w3, b3)

    # Strip batch padding and the (at most 8-wide) output lane padding.
    return out_padded[:B, :output_dim]


def init_params(key, output_dim, state_dim=96, hidden_dim=96):
    """Mimics nn.Linear's uniform(-1/sqrt(fan_in), 1/sqrt(fan_in)) init.
    Weights are stored as (in_features, out_features)."""
    ks = jax.random.split(key, 6)

    def lin(kw, kb, fan_in, fan_out):
        bound = 1.0 / jnp.sqrt(fan_in)
        w = jax.random.uniform(kw, (fan_in, fan_out), jnp.float32, -bound, bound)
        b = jax.random.uniform(kb, (1, fan_out), jnp.float32, -bound, bound)
        return w, b

    w1, b1 = lin(ks[0], ks[1], state_dim, hidden_dim)
    w2, b2 = lin(ks[2], ks[3], hidden_dim, hidden_dim)
    w3, b3 = lin(ks[4], ks[5], hidden_dim, output_dim)
    return dict(w1=w1, b1=b1, w2=w2, b2=b2, w3=w3, b3=b3)


def qnetwork_ref(x, p):
    h1 = _leaky_relu(x @ p["w1"] + p["b1"])
    h2 = _leaky_relu(h1 @ p["w2"] + p["b2"])
    return h2 @ p["w3"] + p["b3"]


if __name__ == "__main__":
    key = jax.random.PRNGKey(0)
    k_x, k_p = jax.random.split(key)

    batch, state_dim, hidden_dim, output_dim = 8, 96, 96, 4
    x = jax.random.normal(k_x, (batch, state_dim), dtype=jnp.float32)
    params = init_params(k_p, output_dim, state_dim, hidden_dim)
    prepared = prepare_params(params)  # hoisted out of the hot path

    out = jax.block_until_ready(qnetwork_forward(x, prepared))
    assert out.shape == (batch, output_dim)

    ref = qnetwork_ref(x, params)
    # f32 operands / f32 accumulation in the kernel; small tolerance covers
    # MXU multi-pass vs XLA default-precision differences.
    assert jnp.allclose(out, ref, atol=2e-2, rtol=2e-2), "mismatch vs f32 reference"

    print("KERNEL_OK")
</pallas_src>

<mosaic_0001>
module attributes {stable_mosaic.version = 11 : i64} {
  func.func @qnetwork_kernel(%arg0: i32, %arg1: memref<8x96xf32, #tpu.memory_space<vmem>>, %arg2: memref<96x128xf32, #tpu.memory_space<vmem>>, %arg3: memref<1x128xf32, #tpu.memory_space<vmem>>, %arg4: memref<128x128xf32, #tpu.memory_space<vmem>>, %arg5: memref<1x128xf32, #tpu.memory_space<vmem>>, %arg6: memref<128x8xf32, #tpu.memory_space<vmem>>, %arg7: memref<1x8xf32, #tpu.memory_space<vmem>>, %arg8: memref<8x8xf32, #tpu.memory_space<vmem>>) attributes {dimension_semantics = [#tpu.dimension_semantics<parallel>], iteration_bounds = array<i64: 1>, scalar_prefetch = 0 : i64, scratch_operands = 0 : i64, tpu.core_type = #tpu.core_type<tc>, window_params = [{transform_indices = @transform_0, window_bounds = array<i64: 8, 96>}, {pipeline_mode = #tpu.pipeline_mode<synchronous>, transform_indices = @transform_1, window_bounds = array<i64: 96, 128>}, {pipeline_mode = #tpu.pipeline_mode<synchronous>, transform_indices = @transform_2, window_bounds = array<i64: 1, 128>}, {pipeline_mode = #tpu.pipeline_mode<synchronous>, transform_indices = @transform_3, window_bounds = array<i64: 128, 128>}, {pipeline_mode = #tpu.pipeline_mode<synchronous>, transform_indices = @transform_4, window_bounds = array<i64: 1, 128>}, {pipeline_mode = #tpu.pipeline_mode<synchronous>, transform_indices = @transform_5, window_bounds = array<i64: 128, 8>}, {pipeline_mode = #tpu.pipeline_mode<synchronous>, transform_indices = @transform_6, window_bounds = array<i64: 1, 8>}, {transform_indices = @transform_7, window_bounds = array<i64: 8, 8>}]} {
    %c0 = arith.constant 0 : index
    %c0_0 = arith.constant 0 : index
    %0 = vector.load %arg1[%c0, %c0_0] : memref<8x96xf32, #tpu.memory_space<vmem>>, vector<8x96xf32>
    %c0_1 = arith.constant 0 : index
    %c0_2 = arith.constant 0 : index
    %1 = vector.load %arg2[%c0_1, %c0_2] : memref<96x128xf32, #tpu.memory_space<vmem>>, vector<96x128xf32>
    %cst = arith.constant dense<0.000000e+00> : vector<8x128xf32>
    %2 = tpu.matmul %0, %1, %cst {dimension_numbers = #tpu.dot_dimension_numbers<[1], [0], [0], [1], [0, 0, 1, 1], [], []>} : vector<8x96xf32>, vector<96x128xf32>, vector<8x128xf32> -> vector<8x128xf32>
    %c0_3 = arith.constant 0 : index
    %c0_4 = arith.constant 0 : index
    %3 = vector.load %arg3[%c0_3, %c0_4] : memref<1x128xf32, #tpu.memory_space<vmem>>, vector<1x128xf32>
    %4 = vector.broadcast %3 : vector<1x128xf32> to vector<8x128xf32>
    %5 = arith.addf %2, %4 : vector<8x128xf32>
    %cst_5 = arith.constant 0.000000e+00 : f32
    %6 = vector.broadcast %cst_5 : f32 to vector<8x128xf32>
    %7 = arith.cmpf ogt, %5, %6 : vector<8x128xf32>
    %cst_6 = arith.constant 0.00999999977 : f32
    %8 = vector.broadcast %cst_6 : f32 to vector<8x128xf32>
    %9 = arith.mulf %8, %5 : vector<8x128xf32>
    %10 = arith.select %7, %5, %9 : vector<8x128xi1>, vector<8x128xf32>
    %c0_7 = arith.constant 0 : index
    %c0_8 = arith.constant 0 : index
    %11 = vector.load %arg4[%c0_7, %c0_8] : memref<128x128xf32, #tpu.memory_space<vmem>>, vector<128x128xf32>
    %cst_9 = arith.constant dense<0.000000e+00> : vector<8x128xf32>
    %12 = tpu.matmul %10, %11, %cst_9 {dimension_numbers = #tpu.dot_dimension_numbers<[1], [0], [0], [1], [0, 0, 1, 1], [], []>} : vector<8x128xf32>, vector<128x128xf32>, vector<8x128xf32> -> vector<8x128xf32>
    %c0_10 = arith.constant 0 : index
    %c0_11 = arith.constant 0 : index
    %13 = vector.load %arg5[%c0_10, %c0_11] : memref<1x128xf32, #tpu.memory_space<vmem>>, vector<1x128xf32>
    %14 = vector.broadcast %13 : vector<1x128xf32> to vector<8x128xf32>
    %15 = arith.addf %12, %14 : vector<8x128xf32>
    %cst_12 = arith.constant 0.000000e+00 : f32
    %16 = vector.broadcast %cst_12 : f32 to vector<8x128xf32>
    %17 = arith.cmpf ogt, %15, %16 : vector<8x128xf32>
    %cst_13 = arith.constant 0.00999999977 : f32
    %18 = vector.broadcast %cst_13 : f32 to vector<8x128xf32>
    %19 = arith.mulf %18, %15 : vector<8x128xf32>
    %20 = arith.select %17, %15, %19 : vector<8x128xi1>, vector<8x128xf32>
    %c0_14 = arith.constant 0 : index
    %c0_15 = arith.constant 0 : index
    %21 = vector.load %arg6[%c0_14, %c0_15] : memref<128x8xf32, #tpu.memory_space<vmem>>, vector<128x8xf32>
    %cst_16 = arith.constant dense<0.000000e+00> : vector<8x8xf32>
    %22 = tpu.matmul %20, %21, %cst_16 {dimension_numbers = #tpu.dot_dimension_numbers<[1], [0], [0], [1], [0, 0, 1, 1], [], []>} : vector<8x128xf32>, vector<128x8xf32>, vector<8x8xf32> -> vector<8x8xf32>
    %c0_17 = arith.constant 0 : index
    %c0_18 = arith.constant 0 : index
    %23 = vector.load %arg7[%c0_17, %c0_18] : memref<1x8xf32, #tpu.memory_space<vmem>>, vector<1x8xf32>
    %24 = vector.broadcast %23 : vector<1x8xf32> to vector<8x8xf32>
    %25 = arith.addf %22, %24 : vector<8x8xf32>
    %c0_19 = arith.constant 0 : index
    %c0_20 = arith.constant 0 : index
    %26 = vector.load %arg8[%c0_19, %c0_20] : memref<8x8xf32, #tpu.memory_space<vmem>>, vector<8x8xf32>
    tpu.vector_store %arg8[%c0_19, %c0_20], %25 {strides = array<i32>} : memref<8x8xf32, #tpu.memory_space<vmem>>, vector<8x8xf32>,
    return
  }
  func.func @transform_0(%arg0: i32) -> (i32, i32) {
    %c0_i32 = arith.constant 0 : i32
    %c0_i32_0 = arith.constant 0 : i32
    return %arg0, %c0_i32 : i32, i32
  }
  func.func @transform_1(%arg0: i32) -> (i32, i32) {
    %c0_i32 = arith.constant 0 : i32
    %c0_i32_0 = arith.constant 0 : i32
    %c0_i32_1 = arith.constant 0 : i32
    return %c0_i32, %c0_i32_0 : i32, i32
  }
  func.func @transform_2(%arg0: i32) -> (i32, i32) {
    %c0_i32 = arith.constant 0 : i32
    %c0_i32_0 = arith.constant 0 : i32
    %c0_i32_1 = arith.constant 0 : i32
    return %c0_i32, %c0_i32_0 : i32, i32
  }
  func.func @transform_3(%arg0: i32) -> (i32, i32) {
    %c0_i32 = arith.constant 0 : i32
    %c0_i32_0 = arith.constant 0 : i32
    %c0_i32_1 = arith.constant 0 : i32
    return %c0_i32, %c0_i32_0 : i32, i32
  }
  func.func @transform_4(%arg0: i32) -> (i32, i32) {
    %c0_i32 = arith.constant 0 : i32
    %c0_i32_0 = arith.constant 0 : i32
    %c0_i32_1 = arith.constant 0 : i32
    return %c0_i32, %c0_i32_0 : i32, i32
  }
  func.func @transform_5(%arg0: i32) -> (i32, i32) {
    %c0_i32 = arith.constant 0 : i32
    %c0_i32_0 = arith.constant 0 : i32
    %c0_i32_1 = arith.constant 0 : i32
    return %c0_i32, %c0_i32_0 : i32, i32
  }
  func.func @transform_6(%arg0: i32) -> (i32, i32) {
    %c0_i32 = arith.constant 0 : i32
    %c0_i32_0 = arith.constant 0 : i32
    %c0_i32_1 = arith.constant 0 : i32
    return %c0_i32, %c0_i32_0 : i32, i32
  }
  func.func @transform_7(%arg0: i32) -> (i32, i32) {
    %c0_i32 = arith.constant 0 : i32
    %c0_i32_0 = arith.constant 0 : i32
    return %arg0, %c0_i32 : i32, i32
  }
}

</mosaic_0001>

<llo_original>
// kernel: tpu_custom_call.1
$region0: #{tpu_custom_call.1}
  #allocation0 [shape = 'u32[]', space=smem, size = 0x4, offset = 0x4, fixed_abs, tag = 'smem constant byte address 0x4 - core index']
  #allocation1 [shape = 'u32[144,128]{1,0:T(1,128)}', space=vmem, size = 0x12000, scoped, tag = 'internal scratch']
  %s0 = inlined_call_operand.vmem [shape: f32[8,96], index: 0, kind: input, shape index: {}]
  %s1 = inlined_call_operand.hbm [shape: f32[96,128], index: 1, kind: input, shape index: {}]
  %s2 = inlined_call_operand.vmem [shape: f32[1,128], index: 2, kind: input, shape index: {}]
  %s3 = inlined_call_operand.vmem [shape: f32[128,128], index: 3, kind: input, shape index: {}]
  %s4 = inlined_call_operand.vmem [shape: f32[1,128], index: 4, kind: input, shape index: {}]
  %s5 = inlined_call_operand.vmem [shape: f32[128,8], index: 5, kind: input, shape index: {}]
  %s6 = inlined_call_operand.vmem [shape: f32[1,8], index: 6, kind: input, shape index: {}]
  %s7 = inlined_call_operand.hbm [shape: f32[8,8], index: 7, kind: output, shape index: {}]
  %s8 = sld [smem:[#allocation0]]
  $region42: #{tpu_custom_call.1} parent=0
    _
  %s10 = ssub.s32 1, %s8
  %s11 = scalar_select 0, %s10, %s8
  $region1: #{tpu_custom_call.1} parent=0
    #allocation2 [shape = 'u8[49152]{0}', space=vmem, size = 0xc000, scoped, tag = 'input window, operand 1, single buffered']
    #allocation3 [shape = 's32[1]{0}', space=sflag, size = 0x4, scoped, tag = 'scoped memory for tpu_custom_call.1']
    #allocation4 [shape = 's32[1]{0}', space=sflag, size = 0x4, scoped, tag = 'scoped memory for tpu_custom_call.1']
    #allocation5 [shape = 'u8[4096]{0}', space=vmem, size = 0x1000, scoped, tag = 'output window, operand 0, single buffered']
    %12 = vsyncpa [#allocation3], 0
    %13 = vsyncpa [#allocation4], 0
    // Predicated region
    $region2: #{tpu_custom_call.1} parent=1 // pred_check
      _
    $region3: #{tpu_custom_call.1} parent=1 // pred_check_branch
      %15 = sbr.rel (0) target = $region5
    $region4: #{tpu_custom_call.1} parent=1 // pred_region
      _
    $region5: #{tpu_custom_call.1} parent=1 // pred_fallthru
      _
    // Predicated region
    $region6: #{tpu_custom_call.1} parent=1 // pred_check
      _
    $region7: #{tpu_custom_call.1} parent=1 // pred_check_branch
      %17 = sbr.rel (0) target = $region9
    $region8: #{tpu_custom_call.1} parent=1 // pred_region
      %s19 = ssub.s32 1536, 1536
      %20 = vsyncadd [#allocation3], %s19
      %s21 = sshll.u32 [#allocation2], 4
      %s22 = int_to_ptr.vmem [resolvable:$true] %s21
      %27 = dma.hbm_to_vmem [thread:$0]  %s1, 1536, %s22, [#allocation3], 128, 128, 8
    $region9: #{tpu_custom_call.1} parent=1 // pred_fallthru
      _
    // Predicated region
    $region10: #{tpu_custom_call.1} parent=1 // pred_check
      _
    $region11: #{tpu_custom_call.1} parent=1 // pred_check_branch
      %29 = sbr.rel (0) target = $region13
    $region12: #{tpu_custom_call.1} parent=1 // pred_region
      _
    $region13: #{tpu_custom_call.1} parent=1 // pred_fallthru
      _
    // Predicated region
    $region14: #{tpu_custom_call.1} parent=1 // pred_check
      _
    $region15: #{tpu_custom_call.1} parent=1 // pred_check_branch
      %31 = sbr.rel (0) target = $region17
    $region16: #{tpu_custom_call.1} parent=1 // pred_region
      _
    $region17: #{tpu_custom_call.1} parent=1 // pred_fallthru
      _
    // Predicated region
    $region18: #{tpu_custom_call.1} parent=1 // pred_check
      _
    $region19: #{tpu_custom_call.1} parent=1 // pred_check_branch
      %33 = sbr.rel (0) target = $region21
    $region20: #{tpu_custom_call.1} parent=1 // pred_region
      _
    $region21: #{tpu_custom_call.1} parent=1 // pred_fallthru
      _
    // Predicated region
    $region22: #{tpu_custom_call.1} parent=1 // pred_check
      _
    $region23: #{tpu_custom_call.1} parent=1 // pred_check_branch
      %35 = sbr.rel (0) target = $region25
    $region24: #{tpu_custom_call.1} parent=1 // pred_region
      _
    $region25: #{tpu_custom_call.1} parent=1 // pred_fallthru
      _
    // Predicated region
    $region26: #{tpu_custom_call.1} parent=1 // pred_check
      _
    $region27: #{tpu_custom_call.1} parent=1 // pred_check_branch
      %37 = sbr.rel (0) target = $region29
    $region28: #{tpu_custom_call.1} parent=1 // pred_region
      _
    $region29: #{tpu_custom_call.1} parent=1 // pred_fallthru
      _
    // Predicated region
    $region30: #{tpu_custom_call.1} parent=1 // pred_check
      _
    $region31: #{tpu_custom_call.1} parent=1 // pred_check_branch
      %39 = sbr.rel (0) target = $region33
    $region32: #{tpu_custom_call.1} parent=1 // pred_region
      %40 = dma.done [#allocation3], 1536
    $region33: #{tpu_custom_call.1} parent=1 // pred_fallthru
      _
    %v41 = vld [vmem:[%s0] sm:$0xff]
    %v42 = vld [vmem:[#allocation2] sm:$0xff]
    %v43 = vld [vmem:[#allocation2 + $0x8] sm:$0xff]
    %v44 = vld [vmem:[#allocation2 + $0x10] sm:$0xff]
    %v45 = vld [vmem:[#allocation2 + $0x18] sm:$0xff]
    %v46 = vld [vmem:[#allocation2 + $0x20] sm:$0xff]
    %v47 = vld [vmem:[#allocation2 + $0x28] sm:$0xff]
    %v48 = vld [vmem:[#allocation2 + $0x30] sm:$0xff]
    %v49 = vld [vmem:[#allocation2 + $0x38] sm:$0xff]
    %v50 = vld [vmem:[#allocation2 + $0x40] sm:$0xff]
    %v51 = vld [vmem:[#allocation2 + $0x48] sm:$0xff]
    %v52 = vld [vmem:[#allocation2 + $0x50] sm:$0xff]
    %v53 = vld [vmem:[#allocation2 + $0x58] sm:$0xff]
    %v54 = vld [vmem:[%s2] sm:$0x1]
    %v56 = vlaneseq
    %v57 = vshrl.u32 %v56, 7
    %v58 = vsub.s32 0, %v57
    %v59 = vrot.slane %v54, %v58
    %vm61 = vcmask 785408
    %v63 = vsel %vm61, %v41, 0
    %65 = vmatprep.subr.mxu0 0.0
    %66 = vmatpush1.msra.mxu0 %v42
    %67 = vmatprep.subr.mxu0 0.0
    %68 = vmatpush1.msra.mxu0 %v43
    %69 = vmatprep.subr.mxu0 0.0
    %70 = vmatpush1.msra.mxu0 %v44
    %71 = vmatprep.subr.mxu0 0.0
    %72 = vmatpush1.msra.mxu0 %v45
    %73 = vmatprep.subr.mxu0 0.0
    %74 = vmatpush1.msra.mxu0 %v46
    %75 = vmatprep.subr.mxu0 0.0
    %76 = vmatpush1.msra.mxu0 %v47
    %77 = vmatprep.subr.mxu0 0.0
    %78 = vmatpush1.msra.mxu0 %v48
    %79 = vmatprep.subr.mxu0 0.0
    %80 = vmatpush1.msra.mxu0 %v49
    %81 = vmatprep.subr.mxu0 0.0
    %82 = vmatpush1.msra.mxu0 %v50
    %83 = vmatprep.subr.mxu0 0.0
    %84 = vmatpush1.msra.mxu0 %v51
    %85 = vmatprep.subr.mxu0 0.0
    %86 = vmatpush1.msra.mxu0 %v52
    %87 = vmatprep.subr.mxu0 0.0
    %88 = vmatpush1.msra.mxu0 %v53
    %89 = vmatprep.subr.mxu0 0.0
    %90 = vmatpush1.msra.mxu0 0.0
    %91 = vmatprep.subr.mxu0 0.0
    %92 = vmatpush1.msra.mxu0 0.0
    %93 = vmatprep.subr.mxu0 0.0
    %94 = vmatpush1.msra.mxu0 0.0
    %95 = vmatprep.subr.mxu0 0.0
    %96 = vmatpush1.msra.mxu0 0.0
    %97 = vmatprep.subr.mxu0 0.0
    %98 = vmatpush1.msra.mxu0 0.0
    %99 = vmatprep.subr.mxu0 0.0
    %100 = vmatpush1.msra.mxu0 0.0
    %101 = vmatprep.subr.mxu0 0.0
    %102 = vmatpush1.msra.mxu0 0.0
    %103 = vmatprep.subr.mxu0 0.0
    %104 = vmatpush1.msra.mxu0 0.0
    %105 = vmatprep.subr.mxu0 0.0
    %106 = vmatpush1.msra.mxu0 0.0
    %107 = vmatprep.subr.mxu0 0.0
    %108 = vmatpush1.msra.mxu0 0.0
    %109 = vmatprep.subr.mxu0 0.0
    %110 = vmatpush1.msra.mxu0 0.0
    %111 = vmatprep.subr.mxu0 0.0
    %112 = vmatpush1.msra.mxu0 0.0
    %113 = vmatprep.subr.mxu0 0.0
    %114 = vmatpush1.msra.mxu0 0.0
    %115 = vmatprep.subr.mxu0 0.0
    %116 = vmatpush1.msra.mxu0 0.0
    %117 = vmatprep.subr.mxu0 0.0
    %118 = vmatpush1.msra.mxu0 0.0
    %119 = vmatprep.subr.mxu0 0.0
    %120 = vmatpush1.msra.mxu0 0.0
    %121 = vmatprep.subr.mxu0 0.0
    %122 = vmatpush1.msra.mxu0 0.0
    %123 = vmatprep.subr.mxu0 0.0
    %124 = vmatpush1.msra.mxu0 0.0
    %125 = vmatprep.subr.mxu0 0.0
    %126 = vmatpush1.msra.mxu0 0.0
    %127 = vmatprep.subr.mxu0 0.0
    %128 = vmatpush1.msra.mxu0 0.0
    %129 = vmatprep.mubr.f32.mxu0 0.0
    %130 = vmatmul.mubr.f32.gmra.mrb[0].mxu0 %v63
    %v131 = vpop.f32.mrb[0].mxu0
    %v132 = vadd.f32 %v59, %v131
    %v133 = vpop.f32.mrb[0].mxu0
    %134 = vdwg.mxu0
    %vm135 = vcmp.gt.f32.partialorder %v132, 0.0
    %v136 = vmul.f32 %v132, 0.01
    %v137 = vsel %vm135, %v132, %v136
    %v138 = vld [vmem:[%s3] sm:$0xff]
    %v139 = vld [vmem:[%s3 + $0x8] sm:$0xff]
    %v140 = vld [vmem:[%s3 + $0x10] sm:$0xff]
    %v141 = vld [vmem:[%s3 + $0x18] sm:$0xff]
    %v142 = vld [vmem:[%s3 + $0x20] sm:$0xff]
    %v143 = vld [vmem:[%s3 + $0x28] sm:$0xff]
    %v144 = vld [vmem:[%s3 + $0x30] sm:$0xff]
    %v145 = vld [vmem:[%s3 + $0x38] sm:$0xff]
    %v146 = vld [vmem:[%s3 + $0x40] sm:$0xff]
    %v147 = vld [vmem:[%s3 + $0x48] sm:$0xff]
    %v148 = vld [vmem:[%s3 + $0x50] sm:$0xff]
    %v149 = vld [vmem:[%s3 + $0x58] sm:$0xff]
    %v150 = vld [vmem:[%s3 + $0x60] sm:$0xff]
    %v151 = vld [vmem:[%s3 + $0x68] sm:$0xff]
    %v152 = vld [vmem:[%s3 + $0x70] sm:$0xff]
    %v153 = vld [vmem:[%s3 + $0x78] sm:$0xff]
    %v154 = vld [vmem:[%s4] sm:$0x1]
    %v156 = vlaneseq
    %v157 = vshrl.u32 %v156, 7
    %v158 = vsub.s32 0, %v157
    %v159 = vrot.slane %v154, %v158
    %161 = vmatprep.subr.mxu0 0.0
    %162 = vmatpush1.msra.mxu0 %v138
    %163 = vmatprep.subr.mxu0 0.0
    %164 = vmatpush1.msra.mxu0 %v139
    %165 = vmatprep.subr.mxu0 0.0
    %166 = vmatpush1.msra.mxu0 %v140
    %167 = vmatprep.subr.mxu0 0.0
    %168 = vmatpush1.msra.mxu0 %v141
    %169 = vmatprep.subr.mxu0 0.0
    %170 = vmatpush1.msra.mxu0 %v142
    %171 = vmatprep.subr.mxu0 0.0
    %172 = vmatpush1.msra.mxu0 %v143
    %173 = vmatprep.subr.mxu0 0.0
    %174 = vmatpush1.msra.mxu0 %v144
    %175 = vmatprep.subr.mxu0 0.0
    %176 = vmatpush1.msra.mxu0 %v145
    %177 = vmatprep.subr.mxu0 0.0
    %178 = vmatpush1.msra.mxu0 %v146
    %179 = vmatprep.subr.mxu0 0.0
    %180 = vmatpush1.msra.mxu0 %v147
    %181 = vmatprep.subr.mxu0 0.0
    %182 = vmatpush1.msra.mxu0 %v148
    %183 = vmatprep.subr.mxu0 0.0
    %184 = vmatpush1.msra.mxu0 %v149
    %185 = vmatprep.subr.mxu0 0.0
    %186 = vmatpush1.msra.mxu0 %v150
    %187 = vmatprep.subr.mxu0 0.0
    %188 = vmatpush1.msra.mxu0 %v151
    %189 = vmatprep.subr.mxu0 0.0
    %190 = vmatpush1.msra.mxu0 %v152
    %191 = vmatprep.subr.mxu0 0.0
    %192 = vmatpush1.msra.mxu0 %v153
    %193 = vmatprep.subr.mxu0 0.0
    %194 = vmatpush1.msra.mxu0 0.0
    %195 = vmatprep.subr.mxu0 0.0
    %196 = vmatpush1.msra.mxu0 0.0
    %197 = vmatprep.subr.mxu0 0.0
    %198 = vmatpush1.msra.mxu0 0.0
    %199 = vmatprep.subr.mxu0 0.0
    %200 = vmatpush1.msra.mxu0 0.0
    %201 = vmatprep.subr.mxu0 0.0
    %202 = vmatpush1.msra.mxu0 0.0
    %203 = vmatprep.subr.mxu0 0.0
    %204 = vmatpush1.msra.mxu0 0.0
    %205 = vmatprep.subr.mxu0 0.0
    %206 = vmatpush1.msra.mxu0 0.0
    %207 = vmatprep.subr.mxu0 0.0
    %208 = vmatpush1.msra.mxu0 0.0
    %209 = vmatprep.subr.mxu0 0.0
    %210 = vmatpush1.msra.mxu0 0.0
    %211 = vmatprep.subr.mxu0 0.0
    %212 = vmatpush1.msra.mxu0 0.0
    %213 = vmatprep.subr.mxu0 0.0
    %214 = vmatpush1.msra.mxu0 0.0
    %215 = vmatprep.subr.mxu0 0.0
    %216 = vmatpush1.msra.mxu0 0.0
    %217 = vmatprep.subr.mxu0 0.0
    %218 = vmatpush1.msra.mxu0 0.0
    %219 = vmatprep.subr.mxu0 0.0
    %220 = vmatpush1.msra.mxu0 0.0
    %221 = vmatprep.subr.mxu0 0.0
    %222 = vmatpush1.msra.mxu0 0.0
    %223 = vmatprep.subr.mxu0 0.0
    %224 = vmatpush1.msra.mxu0 0.0
    %225 = vmatprep.mubr.f32.mxu0 0.0
    %226 = vmatmul.mubr.f32.gmra.mrb[0].mxu0 %v137
    %v227 = vpop.f32.mrb[0].mxu0
    %v228 = vadd.f32 %v159, %v227
    %v229 = vpop.f32.mrb[0].mxu0
    %230 = vdwg.mxu0
    %vm231 = vcmp.gt.f32.partialorder %v228, 0.0
    %v232 = vmul.f32 %v228, 0.01
    %v233 = vsel %vm231, %v228, %v232
    %v234 = vld [vmem:[%s5] sm:$0xff]
    %v235 = vld [vmem:[%s5 + $0x8] sm:$0xff]
    %v236 = vld [vmem:[%s5 + $0x10] sm:$0xff]
    %v237 = vld [vmem:[%s5 + $0x18] sm:$0xff]
    %v238 = vld [vmem:[%s5 + $0x20] sm:$0xff]
    %v239 = vld [vmem:[%s5 + $0x28] sm:$0xff]
    %v240 = vld [vmem:[%s5 + $0x30] sm:$0xff]
    %v241 = vld [vmem:[%s5 + $0x38] sm:$0xff]
    %v242 = vld [vmem:[%s5 + $0x40] sm:$0xff]
    %v243 = vld [vmem:[%s5 + $0x48] sm:$0xff]
    %v244 = vld [vmem:[%s5 + $0x50] sm:$0xff]
    %v245 = vld [vmem:[%s5 + $0x58] sm:$0xff]
    %v246 = vld [vmem:[%s5 + $0x60] sm:$0xff]
    %v247 = vld [vmem:[%s5 + $0x68] sm:$0xff]
    %v248 = vld [vmem:[%s5 + $0x70] sm:$0xff]
    %v249 = vld [vmem:[%s5 + $0x78] sm:$0xff]
    %v250 = vld [vmem:[%s6] sm:$0x1]
    %v252 = vlaneseq
    %v253 = vshrl.u32 %v252, 7
    %v254 = vsub.s32 0, %v253
    %v255 = vrot.slane %v250, %v254
    %257 = vmatprep.subr.mxu0 0.0
    %258 = vmatpush1.msra.mxu0 %v234
    %259 = vmatprep.subr.mxu0 0.0
    %260 = vmatpush1.msra.mxu0 %v235
    %261 = vmatprep.subr.mxu0 0.0
    %262 = vmatpush1.msra.mxu0 %v236
    %263 = vmatprep.subr.mxu0 0.0
    %264 = vmatpush1.msra.mxu0 %v237
    %265 = vmatprep.subr.mxu0 0.0
    %266 = vmatpush1.msra.mxu0 %v238
    %267 = vmatprep.subr.mxu0 0.0
    %268 = vmatpush1.msra.mxu0 %v239
    %269 = vmatprep.subr.mxu0 0.0
    %270 = vmatpush1.msra.mxu0 %v240
    %271 = vmatprep.subr.mxu0 0.0
    %272 = vmatpush1.msra.mxu0 %v241
    %273 = vmatprep.subr.mxu0 0.0
    %274 = vmatpush1.msra.mxu0 %v242
    %275 = vmatprep.subr.mxu0 0.0
    %276 = vmatpush1.msra.mxu0 %v243
    %277 = vmatprep.subr.mxu0 0.0
    %278 = vmatpush1.msra.mxu0 %v244
    %279 = vmatprep.subr.mxu0 0.0
    %280 = vmatpush1.msra.mxu0 %v245
    %281 = vmatprep.subr.mxu0 0.0
    %282 = vmatpush1.msra.mxu0 %v246
    %283 = vmatprep.subr.mxu0 0.0
    %284 = vmatpush1.msra.mxu0 %v247
    %285 = vmatprep.subr.mxu0 0.0
    %286 = vmatpush1.msra.mxu0 %v248
    %287 = vmatprep.subr.mxu0 0.0
    %288 = vmatpush1.msra.mxu0 %v249
    %289 = vmatprep.subr.mxu0 0.0
    %290 = vmatpush1.msra.mxu0 0.0
    %291 = vmatprep.subr.mxu0 0.0
    %292 = vmatpush1.msra.mxu0 0.0
    %293 = vmatprep.subr.mxu0 0.0
    %294 = vmatpush1.msra.mxu0 0.0
    %295 = vmatprep.subr.mxu0 0.0
    %296 = vmatpush1.msra.mxu0 0.0
    %297 = vmatprep.subr.mxu0 0.0
    %298 = vmatpush1.msra.mxu0 0.0
    %299 = vmatprep.subr.mxu0 0.0
    %300 = vmatpush1.msra.mxu0 0.0
    %301 = vmatprep.subr.mxu0 0.0
    %302 = vmatpush1.msra.mxu0 0.0
    %303 = vmatprep.subr.mxu0 0.0
    %304 = vmatpush1.msra.mxu0 0.0
    %305 = vmatprep.subr.mxu0 0.0
    %306 = vmatpush1.msra.mxu0 0.0
    %307 = vmatprep.subr.mxu0 0.0
    %308 = vmatpush1.msra.mxu0 0.0
    %309 = vmatprep.subr.mxu0 0.0
    %310 = vmatpush1.msra.mxu0 0.0
    %311 = vmatprep.subr.mxu0 0.0
    %312 = vmatpush1.msra.mxu0 0.0
    %313 = vmatprep.subr.mxu0 0.0
    %314 = vmatpush1.msra.mxu0 0.0
    %315 = vmatprep.subr.mxu0 0.0
    %316 = vmatpush1.msra.mxu0 0.0
    %317 = vmatprep.subr.mxu0 0.0
    %318 = vmatpush1.msra.mxu0 0.0
    %319 = vmatprep.subr.mxu0 0.0
    %320 = vmatpush1.msra.mxu0 0.0
    %321 = vmatprep.mubr.f32.mxu0 0.0
    %322 = vmatmul.mubr.f32.gmra.mrb[0].mxu0 %v233
    %v323 = vpop.f32.mrb[0].mxu0
    %v324 = vadd.f32 %v255, %v323
    %v325 = vpop.f32.mrb[0].mxu0
    %326 = vdwg.mxu0
    %vm327 = vcmask 64512
    %328 = vst.msk [vmem:[#allocation5] sm:$0xff] %vm327, %v324
    // Predicated region
    $region34: #{tpu_custom_call.1} parent=1 // pred_check
      _
    $region35: #{tpu_custom_call.1} parent=1 // pred_check_branch
      %330 = sbr.rel (0) target = $region37
    $region36: #{tpu_custom_call.1} parent=1 // pred_region
      %s332 = ssub.s32 128, 128
      %333 = vsyncadd [#allocation4], %s332
      %s335 = sshll.u32 [#allocation5], 4
      %s336 = int_to_ptr.vmem [resolvable:$true] %s335
      %338 = dma.vmem_to_hbm [thread:$0]  %s336, 128, %s7, [#allocation4]
    $region37: #{tpu_custom_call.1} parent=1 // pred_fallthru
      _
    // Predicated region
    $region38: #{tpu_custom_call.1} parent=1 // pred_check
      _
    $region39: #{tpu_custom_call.1} parent=1 // pred_check_branch
      %340 = sbr.rel (0) target = $region41
    $region40: #{tpu_custom_call.1} parent=1 // pred_region
      %341 = dma.done [#allocation4], 128
    $region41: #{tpu_custom_call.1} parent=1 // pred_fallthru
      _
    %342 = vsyncpa [#allocation3], 1
    %343 = vsyncpa [#allocation4], 1

</llo_original>
